<compile_context>
chip_gen: v6e
topology: v6e:2x2x1
jax: 0.10.0
libtpu: 0.0.40
codegen_flags: <defaults>
</compile_context>

<pallas_src>
from functools import partial

import numpy as np
import jax
import jax.numpy as jnp
from jax.experimental import pallas as pl
from jax.experimental.pallas import tpu as pltpu

PARAM_RANGES = {
    'use_ma': (0, 1), 'use_rsi': (0, 1), 'use_bb': (0, 1), 'use_macd': (0, 1),
    'use_stoch': (0, 1), 'use_adx': (0, 1), 'use_1h': (0, 1), 'use_4h': (0, 1),
    'use_1d': (0, 1),
    'rsi_buy_threshold': (10, 50), 'rsi_sell_threshold': (50, 90),
    'bb_buy_threshold': (0.001, 0.1), 'bb_sell_threshold': (0.001, 0.1),
    'adx_threshold': (10, 50), 'stop_loss': (0.02, 0.1),
    'take_profit': (0.03, 0.2), 'max_position_size': (0.2, 0.8),
    'signal_threshold': (0.1, 0.5),
}
NUM_PARAMS = len(PARAM_RANGES)      # 18
NP_PAD = 128                        # lane-dense output width (wrapper slices [:18])

# Affine scaling constants, pre-padded to the lane-dense width (padded lanes are 0).
_LO_PAD = np.zeros((1, NP_PAD), dtype=np.float32)
_SPAN_PAD = np.zeros((1, NP_PAD), dtype=np.float32)
_LO_PAD[0, :NUM_PARAMS] = [lo for (lo, hi) in PARAM_RANGES.values()]
_SPAN_PAD[0, :NUM_PARAMS] = [hi - lo for (lo, hi) in PARAM_RANGES.values()]


def _ceil_to(x, m):
    return ((x + m - 1) // m) * m


def strategy_mlp_kernel(nb_ref, x_ref, w1_ref, w2_ref, w3_ref, b12_ref, c3_ref,
                        out_ref, *, tile_b):
    """Per batch tile: Linear+ReLU -> Linear+ReLU -> Linear -> sigmoid; accumulate the
    batch sum of sigmoid activations into the resident output block; on the last step
    mask the ragged tail, divide by the true batch size and apply the affine scaling."""
    i = pl.program_id(0)
    last = pl.num_programs(0) - 1

    @pl.when(i == 0)
    def _():
        out_ref[...] = jnp.zeros_like(out_ref)

    # Fused bias / constant rows (f32, resident).
    b12 = b12_ref[...]            # (2, hidden)
    c3 = c3_ref[...]              # (3, NP_PAD)
    b1, b2 = b12[0:1, :], b12[1:2, :]
    b3, lo, span = c3[0:1, :], c3[1:2, :], c3[2:3, :]

    # Weights are already bf16 (pre-cast once in the wrapper). Activations cast per tile.
    x = x_ref[...].astype(jnp.bfloat16)                           # (TB, in)
    h1 = jnp.dot(x, w1_ref[...], preferred_element_type=jnp.float32) + b1
    h1 = jnp.maximum(h1, 0.0)                                     # ReLU (Dropout = id)
    h2 = jnp.dot(h1.astype(jnp.bfloat16), w2_ref[...],
                 preferred_element_type=jnp.float32) + b2
    h2 = jnp.maximum(h2, 0.0)                                     # ReLU (Dropout = id)
    logits = jnp.dot(h2.astype(jnp.bfloat16), w3_ref[...],
                     preferred_element_type=jnp.float32) + b3
    probs = jax.nn.sigmoid(logits)                                # (TB, NP_PAD), f32

    # All tiles except the last are fully valid: plain accumulation, no mask math.
    @pl.when(i != last)
    def _():
        out_ref[...] += jnp.sum(probs, axis=0, keepdims=True)

    # Last tile may be ragged (grid is cdiv(B, TB) with no host-side padding): the
    # out-of-bounds rows of the partial block are undefined, so SELECT them to zero.
    @pl.when(i == last)
    def _():
        nb = nb_ref[0]                                            # true batch (SMEM)
        row = i * tile_b + jax.lax.broadcasted_iota(jnp.int32, probs.shape, 0)
        masked = jnp.where(row < nb, probs, 0.0)
        total = out_ref[...] + jnp.sum(masked, axis=0, keepdims=True)
        mean = total * (1.0 / nb.astype(jnp.float32))             # mean over true batch
        out_ref[...] = mean * span + lo                           # scaled params


def _run_strategy_mlp_impl(x, params, max_tile=1024):
    """Returns the scaled parameter vector (NUM_PARAMS,) fully on device."""
    w1, b1, w2, b2, w3, b3 = params
    B, input_size = x.shape
    hidden = w1.shape[1]

    # Batch tile: multiple of 8 (f32 sublane), up to `max_tile` rows. No padding of x;
    # the in-kernel select-mask on the last grid step handles the ragged tail.
    TB = min(max_tile, _ceil_to(B, 8))
    grid = (pl.cdiv(B, TB),)

    # One-time prep (tiny): bf16 weights for the MXU, lane-dense last layer, fused
    # bias / constant operands.
    w1b = w1.astype(jnp.bfloat16)
    w2b = w2.astype(jnp.bfloat16)
    w3b = jnp.pad(w3, ((0, 0), (0, NP_PAD - NUM_PARAMS))).astype(jnp.bfloat16)
    b12 = jnp.concatenate([b1, b2], axis=0)                       # (2, hidden) f32
    b3p = jnp.pad(b3, ((0, 0), (0, NP_PAD - NUM_PARAMS)))
    c3 = jnp.concatenate(
        [b3p, jnp.asarray(_LO_PAD), jnp.asarray(_SPAN_PAD)], axis=0)  # (3, NP_PAD) f32

    nb = jnp.full((1,), B, dtype=jnp.int32)                       # scalar-prefetch arg

    resident = lambda i, nb_ref: (0, 0)   # weights/bias/consts: same block every step

    out = pl.pallas_call(
        partial(strategy_mlp_kernel, tile_b=TB),
        out_shape=jax.ShapeDtypeStruct((1, NP_PAD), jnp.float32),
        grid_spec=pltpu.PrefetchScalarGridSpec(
            num_scalar_prefetch=1,
            grid=grid,
            in_specs=[
                pl.BlockSpec((TB, input_size), lambda i, nb_ref: (i, 0)),  # x: batch-tiled
                pl.BlockSpec((input_size, hidden), resident),              # w1 (bf16)
                pl.BlockSpec((hidden, hidden), resident),                  # w2 (bf16)
                pl.BlockSpec((hidden, NP_PAD), resident),                  # w3 (bf16, padded)
                pl.BlockSpec((2, hidden), resident),                       # [b1; b2]
                pl.BlockSpec((3, NP_PAD), resident),                       # [b3; lo; span]
            ],
            out_specs=pl.BlockSpec((1, NP_PAD), resident),
        ),
        # Output accumulates across the batch grid axis -> must be "arbitrary".
        compiler_params=pltpu.CompilerParams(dimension_semantics=("arbitrary",)),
    )(nb, x, w1b, w2b, w3b, b12, c3)

    return out[0, :NUM_PARAMS]


run_strategy_mlp = partial(jax.jit, static_argnames=("max_tile",))(_run_strategy_mlp_impl)


def init_params(key, input_size, hidden_size):
    """Deterministic synthetic parameter init (shapes match the PyTorch module).
    Weights are stored (in, out) = PyTorch Linear.weight transposed."""
    ks = jax.random.split(key, 6)
    w1 = jax.random.normal(ks[0], (input_size, hidden_size), jnp.float32) * 0.1
    b1 = jax.random.normal(ks[1], (1, hidden_size), jnp.float32) * 0.01
    w2 = jax.random.normal(ks[2], (hidden_size, hidden_size), jnp.float32) * 0.1
    b2 = jax.random.normal(ks[3], (1, hidden_size), jnp.float32) * 0.01
    w3 = jax.random.normal(ks[4], (hidden_size, NUM_PARAMS), jnp.float32) * 0.1
    b3 = jax.random.normal(ks[5], (1, NUM_PARAMS), jnp.float32) * 0.01
    return (w1, b1, w2, b2, w3, b3)


def strategy_network_forward(x, params):
    """Full forward: device-side MLP/sigmoid/mean/scaling; ONE host transfer to build
    the returned dict (matching the PyTorch module)."""
    scaled = jax.device_get(run_strategy_mlp(x, params))   # (NUM_PARAMS,)
    out = {}
    for i, (name, (lo, hi)) in enumerate(PARAM_RANGES.items()):
        v = float(scaled[i])
        if name.startswith('use_'):
            out[name] = int(v > 0.5)       # range (0,1) so scaled value == sigmoid mean
        else:
            out[name] = v
    out['ma_short'] = 'ma_20'
    out['ma_mid'] = 'ma_60'
    out['ma_long'] = 'ma_200'
    return out


def _reference_scaled(x, params):
    """Pure-JAX f32 reference of the kernel output."""
    w1, b1, w2, b2, w3, b3 = params
    h1 = jnp.maximum(x @ w1 + b1, 0.0)
    h2 = jnp.maximum(h1 @ w2 + b2, 0.0)
    probs = jax.nn.sigmoid(h2 @ w3 + b3)
    mean = jnp.mean(probs, axis=0)
    return mean * jnp.asarray(_SPAN_PAD)[0, :NUM_PARAMS] + jnp.asarray(_LO_PAD)[0, :NUM_PARAMS]


if __name__ == "__main__":
    input_size = 32
    hidden_size = 32
    span = _SPAN_PAD[0, :NUM_PARAMS]

    key = jax.random.PRNGKey(0)
    k_x, k_p, k_x2 = jax.random.split(key, 3)
    params = init_params(k_p, input_size, hidden_size)

    # --- primary case: tiny batch (single grid step, ragged tile) ---
    batch = 2
    x = jax.random.normal(k_x, (batch, input_size), jnp.float32)
    scaled = run_strategy_mlp(x, params)
    jax.block_until_ready(scaled)
    scaled_np = np.asarray(scaled)
    assert scaled_np.shape == (NUM_PARAMS,)
    assert np.all(np.isfinite(scaled_np))
    ref = np.asarray(_reference_scaled(x, params))
    # bf16 MXU operands -> tolerance proportional to each parameter's range
    assert np.all(np.abs(scaled_np - ref) <= 0.05 * span + 0.05), (scaled_np, ref)

    # --- multi-tile case: forces >1 grid step + ragged last tile + select-mask path ---
    batch2 = 37
    x2 = jax.random.normal(k_x2, (batch2, input_size), jnp.float32)
    scaled2 = np.asarray(jax.block_until_ready(run_strategy_mlp(x2, params, max_tile=16)))
    ref2 = np.asarray(_reference_scaled(x2, params))
    assert np.all(np.isfinite(scaled2))
    assert np.all(np.abs(scaled2 - ref2) <= 0.05 * span + 0.05), (scaled2, ref2)

    # assemble the scaled-parameter dict exactly as the PyTorch forward does
    out = strategy_network_forward(x, params)
    assert set(PARAM_RANGES.keys()).issubset(out.keys())
    assert out['ma_short'] == 'ma_20' and out['ma_long'] == 'ma_200'

    print("KERNEL_OK")
</pallas_src>

<mosaic_0001>
module attributes {stable_mosaic.version = 11 : i64} {
  func.func @strategy_mlp_kernel(%arg0: i32, %arg1: memref<1xi32, #tpu.memory_space<smem>>, %arg2: memref<8x32xf32, #tpu.memory_space<vmem>>, %arg3: memref<32x32xbf16, #tpu.memory_space<vmem>>, %arg4: memref<32x32xbf16, #tpu.memory_space<vmem>>, %arg5: memref<32x128xbf16, #tpu.memory_space<vmem>>, %arg6: memref<2x32xf32, #tpu.memory_space<vmem>>, %arg7: memref<3x128xf32, #tpu.memory_space<vmem>>, %arg8: memref<1x128xf32, #tpu.memory_space<vmem>>) attributes {dimension_semantics = [#tpu.dimension_semantics<arbitrary>], iteration_bounds = array<i64: 1>, scalar_prefetch = 1 : i64, scratch_operands = 0 : i64, tpu.core_type = #tpu.core_type<tc>, window_params = [{transform_indices = @transform_0, window_bounds = array<i64: 8, 32>}, {pipeline_mode = #tpu.pipeline_mode<synchronous>, transform_indices = @transform_1, window_bounds = array<i64: 32, 32>}, {pipeline_mode = #tpu.pipeline_mode<synchronous>, transform_indices = @transform_2, window_bounds = array<i64: 32, 32>}, {pipeline_mode = #tpu.pipeline_mode<synchronous>, transform_indices = @transform_3, window_bounds = array<i64: 32, 128>}, {pipeline_mode = #tpu.pipeline_mode<synchronous>, transform_indices = @transform_4, window_bounds = array<i64: 2, 32>}, {pipeline_mode = #tpu.pipeline_mode<synchronous>, transform_indices = @transform_5, window_bounds = array<i64: 3, 128>}, {pipeline_mode = #tpu.pipeline_mode<synchronous>, transform_indices = @transform_6, window_bounds = array<i64: 1, 128>}]} {
    %c0_i32 = arith.constant 0 : i32
    %0 = arith.cmpi eq, %arg0, %c0_i32 : i32
    %1 = arith.extui %0 : i1 to i32
    %c0_i32_0 = arith.constant 0 : i32
    %2 = arith.cmpi ne, %1, %c0_i32_0 : i32
    scf.if %2 {
      %cst_21 = arith.constant 0.000000e+00 : f32
      %41 = vector.broadcast %cst_21 : f32 to vector<1x128xf32>
      %c0_22 = arith.constant 0 : index
      %c0_23 = arith.constant 0 : index
      %42 = vector.load %arg8[%c0_22, %c0_23] : memref<1x128xf32, #tpu.memory_space<vmem>>, vector<1x128xf32>
      tpu.vector_store %arg8[%c0_22, %c0_23], %41 {strides = array<i32>} : memref<1x128xf32, #tpu.memory_space<vmem>>, vector<1x128xf32>,
    } else {
    }
    %c0 = arith.constant 0 : index
    %c0_1 = arith.constant 0 : index
    %3 = vector.load %arg6[%c0, %c0_1] : memref<2x32xf32, #tpu.memory_space<vmem>>, vector<2x32xf32>
    %c0_2 = arith.constant 0 : index
    %c0_3 = arith.constant 0 : index
    %4 = vector.load %arg7[%c0_2, %c0_3] : memref<3x128xf32, #tpu.memory_space<vmem>>, vector<3x128xf32>
    %5 = vector.extract_strided_slice %3 {offsets = [0, 0], sizes = [1, 32], strides = [1, 1]} : vector<2x32xf32> to vector<1x32xf32>
    %6 = vector.extract_strided_slice %3 {offsets = [1, 0], sizes = [1, 32], strides = [1, 1]} : vector<2x32xf32> to vector<1x32xf32>
    %7 = vector.extract_strided_slice %4 {offsets = [0, 0], sizes = [1, 128], strides = [1, 1]} : vector<3x128xf32> to vector<1x128xf32>
    %8 = vector.extract_strided_slice %4 {offsets = [1, 0], sizes = [1, 128], strides = [1, 1]} : vector<3x128xf32> to vector<1x128xf32>
    %9 = vector.extract_strided_slice %4 {offsets = [2, 0], sizes = [1, 128], strides = [1, 1]} : vector<3x128xf32> to vector<1x128xf32>
    %c0_4 = arith.constant 0 : index
    %c0_5 = arith.constant 0 : index
    %10 = vector.load %arg2[%c0_4, %c0_5] : memref<8x32xf32, #tpu.memory_space<vmem>>, vector<8x32xf32>
    %11 = arith.truncf %10 : vector<8x32xf32> to vector<8x32xbf16>
    %c0_6 = arith.constant 0 : index
    %c0_7 = arith.constant 0 : index
    %12 = vector.load %arg3[%c0_6, %c0_7] : memref<32x32xbf16, #tpu.memory_space<vmem>>, vector<32x32xbf16>
    %cst = arith.constant dense<0.000000e+00> : vector<8x32xf32>
    %13 = tpu.matmul %11, %12, %cst {dimension_numbers = #tpu.dot_dimension_numbers<[1], [0], [0], [1], [0, 0, 1, 1], [], []>} : vector<8x32xbf16>, vector<32x32xbf16>, vector<8x32xf32> -> vector<8x32xf32>
    %14 = vector.broadcast %5 : vector<1x32xf32> to vector<8x32xf32>
    %15 = arith.addf %13, %14 : vector<8x32xf32>
    %cst_8 = arith.constant 0.000000e+00 : f32
    %16 = vector.broadcast %cst_8 : f32 to vector<8x32xf32>
    %17 = arith.maximumf %15, %16 : vector<8x32xf32>
    %18 = arith.truncf %17 : vector<8x32xf32> to vector<8x32xbf16>
    %c0_9 = arith.constant 0 : index
    %c0_10 = arith.constant 0 : index
    %19 = vector.load %arg4[%c0_9, %c0_10] : memref<32x32xbf16, #tpu.memory_space<vmem>>, vector<32x32xbf16>
    %cst_11 = arith.constant dense<0.000000e+00> : vector<8x32xf32>
    %20 = tpu.matmul %18, %19, %cst_11 {dimension_numbers = #tpu.dot_dimension_numbers<[1], [0], [0], [1], [0, 0, 1, 1], [], []>} : vector<8x32xbf16>, vector<32x32xbf16>, vector<8x32xf32> -> vector<8x32xf32>
    %21 = vector.broadcast %6 : vector<1x32xf32> to vector<8x32xf32>
    %22 = arith.addf %20, %21 : vector<8x32xf32>
    %cst_12 = arith.constant 0.000000e+00 : f32
    %23 = vector.broadcast %cst_12 : f32 to vector<8x32xf32>
    %24 = arith.maximumf %22, %23 : vector<8x32xf32>
    %25 = arith.truncf %24 : vector<8x32xf32> to vector<8x32xbf16>
    %c0_13 = arith.constant 0 : index
    %c0_14 = arith.constant 0 : index
    %26 = vector.load %arg5[%c0_13, %c0_14] : memref<32x128xbf16, #tpu.memory_space<vmem>>, vector<32x128xbf16>
    %cst_15 = arith.constant dense<0.000000e+00> : vector<8x128xf32>
    %27 = tpu.matmul %25, %26, %cst_15 {dimension_numbers = #tpu.dot_dimension_numbers<[1], [0], [0], [1], [0, 0, 1, 1], [], []>} : vector<8x32xbf16>, vector<32x128xbf16>, vector<8x128xf32> -> vector<8x128xf32>
    %28 = vector.broadcast %7 : vector<1x128xf32> to vector<8x128xf32>
    %29 = arith.addf %27, %28 : vector<8x128xf32>
    %30 = arith.negf %29 : vector<8x128xf32>
    %31 = math.exp %30 : vector<8x128xf32>
    %cst_16 = arith.constant 1.000000e+00 : f32
    %32 = vector.broadcast %cst_16 : f32 to vector<8x128xf32>
    %33 = arith.addf %32, %31 : vector<8x128xf32>
    %34 = arith.divf %32, %33 : vector<8x128xf32>
    %c0_i32_17 = arith.constant 0 : i32
    %35 = arith.cmpi ne, %arg0, %c0_i32_17 : i32
    %36 = arith.extui %35 : i1 to i32
    %c0_i32_18 = arith.constant 0 : i32
    %37 = arith.cmpi ne, %36, %c0_i32_18 : i32
    scf.if %37 {
      %c0_21 = arith.constant 0 : index
      %c0_22 = arith.constant 0 : index
      %41 = vector.load %arg8[%c0_21, %c0_22] : memref<1x128xf32, #tpu.memory_space<vmem>>, vector<1x128xf32>
      %cst_23 = arith.constant dense<0.000000e+00> : vector<128xf32>
      %42 = vector.multi_reduction <add>, %34, %cst_23 [0] : vector<8x128xf32> to vector<128xf32>
      %43 = vector.shape_cast %42 : vector<128xf32> to vector<1x128xf32>
      %44 = arith.addf %41, %43 : vector<1x128xf32>
      %c0_24 = arith.constant 0 : index
      %c0_25 = arith.constant 0 : index
      %45 = vector.load %arg8[%c0_24, %c0_25] : memref<1x128xf32, #tpu.memory_space<vmem>>, vector<1x128xf32>
      tpu.vector_store %arg8[%c0_24, %c0_25], %44 {strides = array<i32>} : memref<1x128xf32, #tpu.memory_space<vmem>>, vector<1x128xf32>,
    } else {
    }
    %c0_i32_19 = arith.constant 0 : i32
    %38 = arith.cmpi eq, %arg0, %c0_i32_19 : i32
    %39 = arith.extui %38 : i1 to i32
    %c0_i32_20 = arith.constant 0 : i32
    %40 = arith.cmpi ne, %39, %c0_i32_20 : i32
    scf.if %40 {
      %c0_21 = arith.constant 0 : index
      %41 = memref.load %arg1[%c0_21] : memref<1xi32, #tpu.memory_space<smem>>
      %c8_i32 = arith.constant 8 : i32
      %42 = arith.muli %arg0, %c8_i32 : i32
      %43 = tpu.iota {dimensions = array<i32: 0>} : vector<8x128xi32>
      %44 = vector.broadcast %42 : i32 to vector<8x128xi32>
      %45 = arith.addi %44, %43 : vector<8x128xi32>
      %46 = vector.broadcast %41 : i32 to vector<8x128xi32>
      %47 = arith.cmpi slt, %45, %46 : vector<8x128xi32>
      %cst_22 = arith.constant 0.000000e+00 : f32
      %48 = vector.broadcast %cst_22 : f32 to vector<8x128xf32>
      %49 = arith.select %47, %34, %48 : vector<8x128xi1>, vector<8x128xf32>
      %c0_23 = arith.constant 0 : index
      %c0_24 = arith.constant 0 : index
      %50 = vector.load %arg8[%c0_23, %c0_24] : memref<1x128xf32, #tpu.memory_space<vmem>>, vector<1x128xf32>
      %cst_25 = arith.constant dense<0.000000e+00> : vector<128xf32>
      %51 = vector.multi_reduction <add>, %49, %cst_25 [0] : vector<8x128xf32> to vector<128xf32>
      %52 = vector.shape_cast %51 : vector<128xf32> to vector<1x128xf32>
      %53 = arith.addf %50, %52 : vector<1x128xf32>
      %54 = arith.sitofp %41 : i32 to f32
      %cst_26 = arith.constant 1.000000e+00 : f32
      %55 = arith.divf %cst_26, %54 : f32
      %56 = vector.broadcast %55 : f32 to vector<1x128xf32>
      %57 = arith.mulf %53, %56 : vector<1x128xf32>
      %58 = arith.mulf %57, %9 : vector<1x128xf32>
      %59 = arith.addf %58, %8 : vector<1x128xf32>
      %c0_27 = arith.constant 0 : index
      %c0_28 = arith.constant 0 : index
      %60 = vector.load %arg8[%c0_27, %c0_28] : memref<1x128xf32, #tpu.memory_space<vmem>>, vector<1x128xf32>
      tpu.vector_store %arg8[%c0_27, %c0_28], %59 {strides = array<i32>} : memref<1x128xf32, #tpu.memory_space<vmem>>, vector<1x128xf32>,
    } else {
    }
    return
  }
  func.func @transform_0(%arg0: i32, %arg1: memref<1xi32, #tpu.memory_space<smem>>) -> (i32, i32) {
    %c0_i32 = arith.constant 0 : i32
    %c0_i32_0 = arith.constant 0 : i32
    return %arg0, %c0_i32 : i32, i32
  }
  func.func @transform_1(%arg0: i32, %arg1: memref<1xi32, #tpu.memory_space<smem>>) -> (i32, i32) {
    %c0_i32 = arith.constant 0 : i32
    %c0_i32_0 = arith.constant 0 : i32
    %c0_i32_1 = arith.constant 0 : i32
    return %c0_i32, %c0_i32_0 : i32, i32
  }
  func.func @transform_2(%arg0: i32, %arg1: memref<1xi32, #tpu.memory_space<smem>>) -> (i32, i32) {
    %c0_i32 = arith.constant 0 : i32
    %c0_i32_0 = arith.constant 0 : i32
    %c0_i32_1 = arith.constant 0 : i32
    return %c0_i32, %c0_i32_0 : i32, i32
  }
  func.func @transform_3(%arg0: i32, %arg1: memref<1xi32, #tpu.memory_space<smem>>) -> (i32, i32) {
    %c0_i32 = arith.constant 0 : i32
    %c0_i32_0 = arith.constant 0 : i32
    %c0_i32_1 = arith.constant 0 : i32
    return %c0_i32, %c0_i32_0 : i32, i32
  }
  func.func @transform_4(%arg0: i32, %arg1: memref<1xi32, #tpu.memory_space<smem>>) -> (i32, i32) {
    %c0_i32 = arith.constant 0 : i32
    %c0_i32_0 = arith.constant 0 : i32
    %c0_i32_1 = arith.constant 0 : i32
    return %c0_i32, %c0_i32_0 : i32, i32
  }
  func.func @transform_5(%arg0: i32, %arg1: memref<1xi32, #tpu.memory_space<smem>>) -> (i32, i32) {
    %c0_i32 = arith.constant 0 : i32
    %c0_i32_0 = arith.constant 0 : i32
    %c0_i32_1 = arith.constant 0 : i32
    return %c0_i32, %c0_i32_0 : i32, i32
  }
  func.func @transform_6(%arg0: i32, %arg1: memref<1xi32, #tpu.memory_space<smem>>) -> (i32, i32) {
    %c0_i32 = arith.constant 0 : i32
    %c0_i32_0 = arith.constant 0 : i32
    %c0_i32_1 = arith.constant 0 : i32
    return %c0_i32, %c0_i32_0 : i32, i32
  }
}

</mosaic_0001>

<llo_original>
// kernel: _run_strategy_mlp_impl.1
$region0: #{_run_strategy_mlp_impl.1}
  #allocation0 [shape = 'u32[]', space=smem, size = 0x4, offset = 0x4, fixed_abs, tag = 'smem constant byte address 0x4 - core index']
  #allocation1 [shape = 'u32[144,128]{1,0:T(1,128)}', space=vmem, size = 0x12000, scoped, tag = 'internal scratch']
  #allocation2 [shape = 's32[1]{0}', space=sflag, size = 0x4, scoped, tag = 'scoped memory for _run_strategy_mlp_impl.1']
  #allocation3 [shape = 's32[1]{0:T(128)S(6)}', space=smem, size = 0x200, scoped, tag = 'prefetched SMEM operand 0']
  %s0 = inlined_call_operand.<no memory space> [shape: s32[1], index: 0, kind: input, shape index: {}]
  %s1 = inlined_call_operand.vmem [shape: f32[2,32], index: 1, kind: input, shape index: {}]
  %s2 = inlined_call_operand.vmem [shape: bf16[32,32], index: 2, kind: input, shape index: {}]
  %s3 = inlined_call_operand.vmem [shape: bf16[32,32], index: 3, kind: input, shape index: {}]
  %s4 = inlined_call_operand.vmem [shape: bf16[32,128], index: 4, kind: input, shape index: {}]
  %s5 = inlined_call_operand.vmem [shape: f32[2,32], index: 5, kind: input, shape index: {}]
  %s6 = inlined_call_operand.vmem [shape: f32[3,128], index: 6, kind: input, shape index: {}]
  %s7 = inlined_call_operand.vmem [shape: f32[1,128], index: 7, kind: output, shape index: {}]
  %s8 = sld [smem:[#allocation0]]
  $region46: #{_run_strategy_mlp_impl.1} parent=0
    _
  %s10 = ssub.s32 1, %s8
  %s11 = scalar_select 0, %s10, %s8
  %12 = sst [smem:[#allocation3]] %s0
  // Predicated region
  $region2: #{_run_strategy_mlp_impl.1} parent=0 // pred_check
    _
  $region3: #{_run_strategy_mlp_impl.1} parent=0 // pred_check_branch
    %14 = sbr.rel (0) target = $region5
  $region4: #{_run_strategy_mlp_impl.1} parent=0 // pred_region
    _
  $region5: #{_run_strategy_mlp_impl.1} parent=0 // pred_fallthru
    _
  // Predicated region
  $region6: #{_run_strategy_mlp_impl.1} parent=0 // pred_check
    _
  $region7: #{_run_strategy_mlp_impl.1} parent=0 // pred_check_branch
    %16 = sbr.rel (0) target = $region9
  $region8: #{_run_strategy_mlp_impl.1} parent=0 // pred_region
    _
  $region9: #{_run_strategy_mlp_impl.1} parent=0 // pred_fallthru
    _
  // Predicated region
  $region10: #{_run_strategy_mlp_impl.1} parent=0 // pred_check
    _
  $region11: #{_run_strategy_mlp_impl.1} parent=0 // pred_check_branch
    %18 = sbr.rel (0) target = $region13
  $region12: #{_run_strategy_mlp_impl.1} parent=0 // pred_region
    _
  $region13: #{_run_strategy_mlp_impl.1} parent=0 // pred_fallthru
    _
  // Predicated region
  $region14: #{_run_strategy_mlp_impl.1} parent=0 // pred_check
    _
  $region15: #{_run_strategy_mlp_impl.1} parent=0 // pred_check_branch
    %20 = sbr.rel (0) target = $region17
  $region16: #{_run_strategy_mlp_impl.1} parent=0 // pred_region
    _
  $region17: #{_run_strategy_mlp_impl.1} parent=0 // pred_fallthru
    _
  // Predicated region
  $region18: #{_run_strategy_mlp_impl.1} parent=0 // pred_check
    _
  $region19: #{_run_strategy_mlp_impl.1} parent=0 // pred_check_branch
    %22 = sbr.rel (0) target = $region21
  $region20: #{_run_strategy_mlp_impl.1} parent=0 // pred_region
    _
  $region21: #{_run_strategy_mlp_impl.1} parent=0 // pred_fallthru
    _
  // Predicated region
  $region22: #{_run_strategy_mlp_impl.1} parent=0 // pred_check
    _
  $region23: #{_run_strategy_mlp_impl.1} parent=0 // pred_check_branch
    %24 = sbr.rel (0) target = $region25
  $region24: #{_run_strategy_mlp_impl.1} parent=0 // pred_region
    _
  $region25: #{_run_strategy_mlp_impl.1} parent=0 // pred_fallthru
    _
  %p26 = scmp.eq.s32.totalorder 0, 0
  // Predicated region
  $region26: #{_run_strategy_mlp_impl.1} parent=0 // pred_check
    %p27 = pneg %p26
  $region27: #{_run_strategy_mlp_impl.1} parent=0 // pred_check_branch
    %29 = sbr.rel (%p27) target = $region29
  $region28: #{_run_strategy_mlp_impl.1} parent=0 // pred_region
    %30 = vst [vmem:[%s7] sm:$0x1] 0.0
  $region29: #{_run_strategy_mlp_impl.1} parent=0 // pred_fallthru
    _
  %v31 = vld [vmem:[%s5] sm:$0x3]
  %v32 = vld [vmem:[%s6] sm:$0x7]
  %v33 = vld [vmem:[%s1] sm:$0xff]
  %v34 = vpack.c.bf16 %v33, %v33
  %v35 = vld [vmem:[%s2] sm:$0xf]
  %v36 = vld [vmem:[%s2 + $0x4] sm:$0xf]
  %v37 = vld [vmem:[%s2 + $0x8] sm:$0xf]
  %v38 = vld [vmem:[%s2 + $0xc] sm:$0xf]
  %v39 = vlaneseq
  %v40 = vshrl.u32 %v39, 7
  %v41 = vsub.s32 0, %v40
  %v42 = vrot.slane %v31, %v41
  %v47 = vunpack.c.l.b16 %v35
  %v48 = vunpack.c.l.b16 %v36
  %v49 = vunpack.c.l.b16 %v37
  %v50 = vunpack.c.l.b16 %v38
  %v51 = vpack.c.b16 %v48, %v47
  %v52 = vpack.c.b16 %v50, %v49
  %vm55 = vcmask 261120
  %v57 = vsel %vm55, %v34, 0
  %59 = vmatprep.subr.bf16.mxu0 0
  %60 = vmatpush1.bf16.msra.mxu0 0
  %61 = vmatprep.subr.bf16.mxu0 0
  %62 = vmatpush1.bf16.msra.mxu0 0
  %63 = vmatprep.subr.bf16.mxu0 0
  %64 = vmatpush1.bf16.msra.mxu0 0
  %65 = vmatprep.subr.bf16.mxu0 0
  %66 = vmatpush1.bf16.msra.mxu0 0
  %67 = vmatprep.subr.bf16.mxu0 0
  %68 = vmatpush1.bf16.msra.mxu0 0
  %69 = vmatprep.subr.bf16.mxu0 0
  %70 = vmatpush1.bf16.msra.mxu0 0
  %71 = vmatprep.subr.bf16.mxu0 0
  %72 = vmatpush1.bf16.msra.mxu0 %v52
  %73 = vmatprep.subr.bf16.mxu0 0
  %74 = vmatpush1.bf16.msra.mxu0 %v51
  %75 = vmatprep.subr.bf16.mxu0 0
  %76 = vmatpush2.bf16.msra.mxu0 0
  %77 = vmatprep.subr.bf16.mxu0 0
  %78 = vmatpush2.bf16.msra.mxu0 0
  %79 = vmatprep.subr.bf16.mxu0 0
  %80 = vmatpush2.bf16.msra.mxu0 0
  %81 = vmatprep.subr.bf16.mxu0 0
  %82 = vmatpush2.bf16.msra.mxu0 0
  %83 = vmatprep.subr.bf16.mxu0 0
  %84 = vmatpush2.bf16.msra.mxu0 0
  %85 = vmatprep.subr.bf16.mxu0 0
  %86 = vmatpush2.bf16.msra.mxu0 0
  %87 = vmatprep.subr.bf16.mxu0 0
  %88 = vmatpush2.bf16.msra.mxu0 0
  %89 = vmatprep.subr.bf16.mxu0 0
  %90 = vmatpush2.bf16.msra.mxu0 0
  %91 = vmatprep.mubr.bf16.mxu0 0
  %92 = vmatmul.mubr.bf16.gmra.mxu0 %v57
  %v93 = vpop.f32.mrf.mxu0
  %v94 = vadd.f32 %v42, %v93
  %v95 = vpop.f32.mrf.mxu0
  %v96 = vpop.f32.mrf.mxu0
  %v97 = vpop.f32.mrf.mxu0
  %98 = vdwg.mxu0
  %v99 = vmax.f32 %v94, 0.0
  %v100 = vpack.c.bf16 %v99, %v99
  %v101 = vld [vmem:[%s3] sm:$0xf]
  %v102 = vld [vmem:[%s3 + $0x4] sm:$0xf]
  %v103 = vld [vmem:[%s3 + $0x8] sm:$0xf]
  %v104 = vld [vmem:[%s3 + $0xc] sm:$0xf]
  %v105 = vlaneseq
  %v106 = vshrl.u32 %v105, 7
  %v107 = vsub.s32 1, %v106
  %v108 = vrot.slane %v31, %v107
  %v113 = vunpack.c.l.b16 %v101
  %v114 = vunpack.c.l.b16 %v102
  %v115 = vunpack.c.l.b16 %v103
  %v116 = vunpack.c.l.b16 %v104
  %v117 = vpack.c.b16 %v114, %v113
  %v118 = vpack.c.b16 %v116, %v115
  %v122 = vsel %vm55, %v100, 0
  %124 = vmatprep.subr.bf16.mxu0 0
  %125 = vmatpush1.bf16.msra.mxu0 0
  %126 = vmatprep.subr.bf16.mxu0 0
  %127 = vmatpush1.bf16.msra.mxu0 0
  %128 = vmatprep.subr.bf16.mxu0 0
  %129 = vmatpush1.bf16.msra.mxu0 0
  %130 = vmatprep.subr.bf16.mxu0 0
  %131 = vmatpush1.bf16.msra.mxu0 0
  %132 = vmatprep.subr.bf16.mxu0 0
  %133 = vmatpush1.bf16.msra.mxu0 0
  %134 = vmatprep.subr.bf16.mxu0 0
  %135 = vmatpush1.bf16.msra.mxu0 0
  %136 = vmatprep.subr.bf16.mxu0 0
  %137 = vmatpush1.bf16.msra.mxu0 %v118
  %138 = vmatprep.subr.bf16.mxu0 0
  %139 = vmatpush1.bf16.msra.mxu0 %v117
  %140 = vmatprep.subr.bf16.mxu0 0
  %141 = vmatpush2.bf16.msra.mxu0 0
  %142 = vmatprep.subr.bf16.mxu0 0
  %143 = vmatpush2.bf16.msra.mxu0 0
  %144 = vmatprep.subr.bf16.mxu0 0
  %145 = vmatpush2.bf16.msra.mxu0 0
  %146 = vmatprep.subr.bf16.mxu0 0
  %147 = vmatpush2.bf16.msra.mxu0 0
  %148 = vmatprep.subr.bf16.mxu0 0
  %149 = vmatpush2.bf16.msra.mxu0 0
  %150 = vmatprep.subr.bf16.mxu0 0
  %151 = vmatpush2.bf16.msra.mxu0 0
  %152 = vmatprep.subr.bf16.mxu0 0
  %153 = vmatpush2.bf16.msra.mxu0 0
  %154 = vmatprep.subr.bf16.mxu0 0
  %155 = vmatpush2.bf16.msra.mxu0 0
  %156 = vmatprep.mubr.bf16.mxu0 0
  %157 = vmatmul.mubr.bf16.gmra.mxu0 %v122
  %v158 = vpop.f32.mrf.mxu0
  %v159 = vadd.f32 %v108, %v158
  %v160 = vpop.f32.mrf.mxu0
  %v161 = vpop.f32.mrf.mxu0
  %v162 = vpop.f32.mrf.mxu0
  %163 = vdwg.mxu0
  %v164 = vmax.f32 %v159, 0.0
  %v165 = vpack.c.bf16 %v164, %v164
  %v166 = vld [vmem:[%s4] sm:$0xf]
  %v167 = vld [vmem:[%s4 + $0x4] sm:$0xf]
  %v168 = vld [vmem:[%s4 + $0x8] sm:$0xf]
  %v169 = vld [vmem:[%s4 + $0xc] sm:$0xf]
  %v170 = vlaneseq
  %v171 = vshrl.u32 %v170, 7
  %v172 = vsub.s32 0, %v171
  %v173 = vrot.slane %v32, %v172
  %v178 = vunpack.c.l.b16 %v166
  %v179 = vunpack.c.l.b16 %v167
  %v180 = vunpack.c.l.b16 %v168
  %v181 = vunpack.c.l.b16 %v169
  %v182 = vpack.c.b16 %v179, %v178
  %v183 = vpack.c.b16 %v181, %v180
  %v187 = vsel %vm55, %v165, 0
  %189 = vmatprep.subr.bf16.mxu0 0
  %190 = vmatpush1.bf16.msra.mxu0 0
  %191 = vmatprep.subr.bf16.mxu0 0
  %192 = vmatpush1.bf16.msra.mxu0 0
  %193 = vmatprep.subr.bf16.mxu0 0
  %194 = vmatpush1.bf16.msra.mxu0 0
  %195 = vmatprep.subr.bf16.mxu0 0
  %196 = vmatpush1.bf16.msra.mxu0 0
  %197 = vmatprep.subr.bf16.mxu0 0
  %198 = vmatpush1.bf16.msra.mxu0 0
  %199 = vmatprep.subr.bf16.mxu0 0
  %200 = vmatpush1.bf16.msra.mxu0 0
  %201 = vmatprep.subr.bf16.mxu0 0
  %202 = vmatpush1.bf16.msra.mxu0 %v183
  %203 = vmatprep.subr.bf16.mxu0 0
  %204 = vmatpush1.bf16.msra.mxu0 %v182
  %205 = vmatprep.subr.bf16.mxu0 0
  %206 = vmatpush2.bf16.msra.mxu0 0
  %207 = vmatprep.subr.bf16.mxu0 0
  %208 = vmatpush2.bf16.msra.mxu0 0
  %209 = vmatprep.subr.bf16.mxu0 0
  %210 = vmatpush2.bf16.msra.mxu0 0
  %211 = vmatprep.subr.bf16.mxu0 0
  %212 = vmatpush2.bf16.msra.mxu0 0
  %213 = vmatprep.subr.bf16.mxu0 0
  %214 = vmatpush2.bf16.msra.mxu0 0
  %215 = vmatprep.subr.bf16.mxu0 0
  %216 = vmatpush2.bf16.msra.mxu0 0
  %217 = vmatprep.subr.bf16.mxu0 0
  %218 = vmatpush2.bf16.msra.mxu0 0
  %219 = vmatprep.subr.bf16.mxu0 0
  %220 = vmatpush2.bf16.msra.mxu0 0
  %221 = vmatprep.mubr.bf16.mxu0 0
  %222 = vmatmul.mubr.bf16.gmra.mxu0 %v187
  %v223 = vpop.f32.mrf.mxu0
  %v224 = vadd.f32 %v173, %v223
  %v225 = vpop.f32.mrf.mxu0
  %v226 = vpop.f32.mrf.mxu0
  %v227 = vpop.f32.mrf.mxu0
  %228 = vdwg.mxu0
  %v229 = vxor.u32 %v224, 2147483648
  %v230 = vmul.f32 %v229, 1.442695
  %v231 = vpow.pop %v230
  %v232 = vadd.f32 %v231, 1.0
  %v233 = vrcp.pop %v232
  %v234 = vmul.f32 1.0, %v233
  %p235 = scmp.ne.s32.totalorder 0, 0
  // Predicated region
  $region30: #{_run_strategy_mlp_impl.1} parent=0 // pred_check
    %p236 = pneg %p235
  $region31: #{_run_strategy_mlp_impl.1} parent=0 // pred_check_branch
    %238 = sbr.rel (%p236) target = $region33
  $region32: #{_run_strategy_mlp_impl.1} parent=0 // pred_region
    %v239 = vld [vmem:[%s7] sm:$0x1]
    %v240 = vrot.slane %v234, 4
    %v241 = vadd.f32 %v234, %v240
    %v242 = vrot.slane %v241, 2
    %v243 = vadd.f32 %v241, %v242
    %v244 = vrot.slane %v243, 1
    %v245 = vadd.f32 %v243, %v244
    %v246 = vadd.f32 %v239, %v245
    %247 = vst [vmem:[%s7] sm:$0x1] %v246
  $region33: #{_run_strategy_mlp_impl.1} parent=0 // pred_fallthru
    _
  // Predicated region
  $region34: #{_run_strategy_mlp_impl.1} parent=0 // pred_check
    %p248 = pneg %p26
  $region35: #{_run_strategy_mlp_impl.1} parent=0 // pred_check_branch
    %250 = sbr.rel (%p248) target = $region37
  $region36: #{_run_strategy_mlp_impl.1} parent=0 // pred_region
    %s251 = sld [smem:[#allocation3]]
    %s252 = smul.u32 0, 8
    %v253 = vlaneseq
    %v254 = vshrl.u32 %v253, 7
    %v255 = vstv %s252
    %v256 = vadd.s32 %v255, %v254
    %v257 = vstv %s251
    %vm258 = vcmp.lt.s32.totalorder %v256, %v257
    %v259 = vsel %vm258, %v234, 0.0
    %v260 = vld [vmem:[%s7] sm:$0x1]
    %v261 = vrot.slane %v259, 4
    %v262 = vadd.f32 %v259, %v261
    %v263 = vrot.slane %v262, 2
    %v264 = vadd.f32 %v262, %v263
    %v265 = vrot.slane %v264, 1
    %v266 = vadd.f32 %v264, %v265
    %v267 = vadd.f32 %v260, %v266
    %s268 = scvt.s32.f32 %s251
    %v269 = vstv %s268
    %v270 = vrcp.pop %v269
    %s271 = vtos %v270
    %v272 = vstv %s271
    %v273 = vmul.f32 %v267, %v272
    %v276 = vunpack.c.l.s4 1966171168
    %v277 = vunpack.c.0.s8 %v276
    %v278 = vlaneseq
    %v279 = vshrl.u32 %v278, 7
    %v280 = vsub.s32 %v277, %v279
    %v281 = vrot.slane %v32, %v280
    %v283 = vunpack.c.l.s4 1966171168
    %v284 = vunpack.c.0.s8 %v283
    %v285 = vlaneseq
    %v286 = vshrl.u32 %v285, 7
    %v287 = vsub.s32 %v284, %v286
    %v288 = vrot.slane %v281, %v287
    %v289 = vcombine.high %v288, %v288
    %v291 = vmul.f32 %v273, %v289
    %v292 = vcombine.high %v281, %v281
    %v294 = vunpack.c.l.s4 1966171168
    %v295 = vunpack.c.0.s8 %v294
    %v296 = vlaneseq
    %v297 = vshrl.u32 %v296, 7
    %v298 = vsub.s32 %v295, %v297
    %v299 = vrot.slane %v292, %v298
    %v301 = vadd.f32 %v291, %v299
    %302 = vst [vmem:[%s7] sm:$0x1] %v301
  $region37: #{_run_strategy_mlp_impl.1} parent=0 // pred_fallthru
    _
  // Predicated region
  $region38: #{_run_strategy_mlp_impl.1} parent=0 // pred_check
    _
  $region39: #{_run_strategy_mlp_impl.1} parent=0 // pred_check_branch
    %304 = sbr.rel (0) target = $region41
  $region40: #{_run_strategy_mlp_impl.1} parent=0 // pred_region
    _
  $region41: #{_run_strategy_mlp_impl.1} parent=0 // pred_fallthru
    _
  // Predicated region
  $region42: #{_run_strategy_mlp_impl.1} parent=0 // pred_check
    _
  $region43: #{_run_strategy_mlp_impl.1} parent=0 // pred_check_branch
    %306 = sbr.rel (0) target = $region45
  $region44: #{_run_strategy_mlp_impl.1} parent=0 // pred_region
    _
  $region45: #{_run_strategy_mlp_impl.1} parent=0 // pred_fallthru
    _

</llo_original>
